<compile_context>
chip_gen: v7x
topology: tpu7x:2x2x1
jax: 0.10.0
libtpu: 0.0.40
codegen_flags: <defaults>
</compile_context>

<pallas_src>
import math
import functools

import numpy as np
import jax
import jax.numpy as jnp
from jax import lax
from jax.experimental import pallas as pl
from jax.experimental.pallas import tpu as pltpu


def _c32(x: int):
    """Python int -> wrapped int32 constant (two's complement)."""
    x &= 0xFFFFFFFF
    if x >= 1 << 31:
        x -= 1 << 32
    return jnp.int32(x)


# murmur3-style mixing constants (as wrapped int32)
_GOLDEN = 0x9E3779B9
_MIX1 = 0x85EBCA6B
_MIX2 = 0xC2B2AE35


def _pe_kernel(seed_ref, x_ref, pos_ref, o_ref, *,
               p, apply_dropout, batch, rows_per_tile):
    # x_ref:   (tS, B*E)  activation tile (lane-dense 2D view)
    # pos_ref: (tS, E)    positional rows for this tile (same dtype as x)
    x = x_ref[...]
    pos = pos_ref[...]

    # Broadcast pos over the batch by concatenating B copies along lanes:
    # row s of the 2D view is [x[s,0,:], x[s,1,:], ...] so the matching
    # positional row is [pos[s,:]] * B along the lane axis.
    pos_row = jnp.concatenate([pos] * batch, axis=-1) if batch > 1 else pos

    y = x.astype(jnp.float32) + pos_row.astype(jnp.float32)

    if apply_dropout and p > 0.0:
        t_rows, cols = x.shape  # static tile shape
        row0 = pl.program_id(0) * rows_per_tile          # int32 scalar
        r = lax.broadcasted_iota(jnp.int32, (t_rows, cols), 0)
        c = lax.broadcasted_iota(jnp.int32, (t_rows, cols), 1)
        # Global flat element index (tiling-invariant counter).
        h = (row0 + r) * cols + c
        # Mix with the seed, then murmur-style finalizer (wrapping int32
        # multiplies + logical shifts only -> portable to Mosaic & interpret).
        h = h ^ (seed_ref[0] * _c32(_GOLDEN))
        h = h ^ lax.shift_right_logical(h, jnp.int32(16))
        h = h * _c32(_MIX1)
        h = h ^ lax.shift_right_logical(h, jnp.int32(13))
        h = h * _c32(_MIX2)
        h = h ^ lax.shift_right_logical(h, jnp.int32(16))

        # Inverted dropout: keep with prob (1 - p). h is ~uniform over the
        # full signed 32-bit range, so a single signed integer threshold
        # compare gives an exact keep probability.
        thresh = int(round(p * (1 << 32))) - (1 << 31)
        keep = h >= _c32(thresh)
        scale = jnp.float32(1.0 / (1.0 - p))
        y = jnp.where(keep, y * scale, jnp.float32(0.0))

    o_ref[...] = y.astype(o_ref.dtype)


def make_pos_embedding(emb_size: int, maxlen: int = 5000) -> jnp.ndarray:
    """Deterministic sinusoidal table, identical to the PyTorch __init__."""
    den = jnp.exp(
        -jnp.arange(0, emb_size, 2, dtype=jnp.float32) * math.log(10000.0) / emb_size
    )
    pos = jnp.arange(0, maxlen, dtype=jnp.float32).reshape(maxlen, 1)
    pe = jnp.zeros((maxlen, emb_size), dtype=jnp.float32)
    pe = pe.at[:, 0::2].set(jnp.sin(pos * den))
    pe = pe.at[:, 1::2].set(jnp.cos(pos * den))
    return pe[:, None, :]  # (maxlen, 1, emb_size)


def _choose_tile_rows(S: int, row_bytes: int, target_bytes: int = 2 << 20) -> int:
    """Pick tile rows so one tile is ~target_bytes, multiple of 8 (sublanes)."""
    t = max(1, target_bytes // max(1, row_bytes))
    t = (t // 8) * 8
    if t < 8:
        t = 8
    return min(S, t)


def positional_encoding(token_embedding: jnp.ndarray,
                        pos_embedding: jnp.ndarray,
                        seed: jnp.ndarray,
                        dropout_p: float = 0.1,
                        train: bool = True) -> jnp.ndarray:
    """token_embedding: (S, B, E); pos_embedding: (maxlen, 1, E); seed: (1,) int32."""
    assert 0.0 <= dropout_p < 1.0
    S, B, E = token_embedding.shape
    dtype = token_embedding.dtype

    # Same slice as self.pos_embedding[:x.size(0)], cast to the activation
    # dtype so the streamed pos bytes match the activation precision.
    pos2d = pos_embedding[:S, 0, :].astype(dtype)        # (S, E)
    x2d = token_embedding.reshape(S, B * E)              # free reshape (lane-dense)

    row_bytes = B * E * jnp.dtype(dtype).itemsize
    tS = _choose_tile_rows(S, row_bytes)
    grid = (pl.cdiv(S, tS),)

    kernel = functools.partial(
        _pe_kernel,
        p=float(dropout_p),
        apply_dropout=bool(train) and dropout_p > 0.0,
        batch=B,
        rows_per_tile=tS,
    )

    out2d = pl.pallas_call(
        kernel,
        out_shape=jax.ShapeDtypeStruct((S, B * E), dtype),
        grid_spec=pltpu.PrefetchScalarGridSpec(
            num_scalar_prefetch=1,                       # dropout seed in SMEM
            grid=grid,
            in_specs=[
                pl.BlockSpec((tS, B * E), lambda i, seed_ref: (i, 0)),
                pl.BlockSpec((tS, E), lambda i, seed_ref: (i, 0)),
            ],
            out_specs=pl.BlockSpec((tS, B * E), lambda i, seed_ref: (i, 0)),
        ),
        compiler_params=pltpu.CompilerParams(
            dimension_semantics=("parallel",),           # v7x: shard tiles over 2 TCs
        ),
    )(seed, x2d, pos2d)

    return out2d.reshape(S, B, E)


if __name__ == "__main__":
    # Small shapes consistent with the module: seq=8, batch=2, emb_size=32.
    S, B, E = 8, 2, 32
    key = jax.random.PRNGKey(0)
    x = jax.random.normal(key, (S, B, E), dtype=jnp.float32)

    pos_emb = make_pos_embedding(emb_size=E, maxlen=64)
    seed = jnp.array([0], dtype=jnp.int32)
    p = 0.1

    # Training-mode forward (dropout active inside the kernel).
    out_train = jax.block_until_ready(
        positional_encoding(x, pos_emb, seed, dropout_p=p, train=True))

    # Eval-mode forward (dropout = identity) — check against pure JAX.
    out_eval = jax.block_until_ready(
        positional_encoding(x, pos_emb, seed, dropout_p=p, train=False))

    ref = x + pos_emb[:S]
    assert out_eval.shape == (S, B, E)
    assert jnp.allclose(out_eval, ref, atol=1e-5, rtol=1e-5), "eval-mode mismatch"

    # Training mode: every element must be either dropped (0) or kept and
    # scaled by 1/(1-p).
    scaled = ref / (1.0 - p)
    ok = jnp.logical_or(out_train == 0.0,
                        jnp.isclose(out_train, scaled, atol=1e-5, rtol=1e-5))
    assert bool(jnp.all(ok)), "train-mode dropout semantics mismatch"

    print("KERNEL_OK")
</pallas_src>

<mosaic_0001>
module attributes {stable_mosaic.version = 11 : i64} {
  func.func @_pe_kernel(%arg0: i32, %arg1: memref<1xi32, #tpu.memory_space<smem>>, %arg2: memref<8x64xf32, #tpu.memory_space<vmem>>, %arg3: memref<8x32xf32, #tpu.memory_space<vmem>>, %arg4: memref<8x64xf32, #tpu.memory_space<vmem>>) attributes {dimension_semantics = [#tpu.dimension_semantics<parallel>], iteration_bounds = array<i64: 1>, scalar_prefetch = 1 : i64, scratch_operands = 0 : i64, tpu.core_type = #tpu.core_type<tc>, window_params = [{transform_indices = @transform_0, window_bounds = array<i64: 8, 64>}, {transform_indices = @transform_1, window_bounds = array<i64: 8, 32>}, {transform_indices = @transform_2, window_bounds = array<i64: 8, 64>}]} {
    %c0 = arith.constant 0 : index
    %c0_0 = arith.constant 0 : index
    %0 = vector.load %arg2[%c0, %c0_0] : memref<8x64xf32, #tpu.memory_space<vmem>>, vector<8x64xf32>
    %c0_1 = arith.constant 0 : index
    %c0_2 = arith.constant 0 : index
    %1 = vector.load %arg3[%c0_1, %c0_2] : memref<8x32xf32, #tpu.memory_space<vmem>>, vector<8x32xf32>
    %2 = tpu.concatenate %1, %1 in 1 : vector<8x32xf32>, vector<8x32xf32> -> vector<8x64xf32>
    %3 = arith.addf %0, %2 : vector<8x64xf32>
    %c8_i32 = arith.constant 8 : i32
    %4 = arith.muli %arg0, %c8_i32 : i32
    %5 = tpu.iota {dimensions = array<i32: 0>} : vector<8x64xi32>
    %6 = tpu.iota {dimensions = array<i32: 1>} : vector<8x64xi32>
    %7 = vector.broadcast %4 : i32 to vector<8x64xi32>
    %8 = arith.addi %7, %5 : vector<8x64xi32>
    %c64_i32 = arith.constant 64 : i32
    %9 = vector.broadcast %c64_i32 : i32 to vector<8x64xi32>
    %10 = arith.muli %8, %9 : vector<8x64xi32>
    %11 = arith.addi %10, %6 : vector<8x64xi32>
    %c0_3 = arith.constant 0 : index
    %12 = memref.load %arg1[%c0_3] : memref<1xi32, #tpu.memory_space<smem>>
    %c-1640531527_i32 = arith.constant -1640531527 : i32
    %13 = arith.muli %12, %c-1640531527_i32 : i32
    %14 = vector.broadcast %13 : i32 to vector<8x64xi32>
    %15 = arith.xori %11, %14 : vector<8x64xi32>
    %c16_i32 = arith.constant 16 : i32
    %16 = vector.broadcast %c16_i32 : i32 to vector<8x64xi32>
    %17 = arith.shrui %15, %16 : vector<8x64xi32>
    %18 = arith.xori %15, %17 : vector<8x64xi32>
    %c-2048144789_i32 = arith.constant -2048144789 : i32
    %19 = vector.broadcast %c-2048144789_i32 : i32 to vector<8x64xi32>
    %20 = arith.muli %18, %19 : vector<8x64xi32>
    %c13_i32 = arith.constant 13 : i32
    %21 = vector.broadcast %c13_i32 : i32 to vector<8x64xi32>
    %22 = arith.shrui %20, %21 : vector<8x64xi32>
    %23 = arith.xori %20, %22 : vector<8x64xi32>
    %c-1028477387_i32 = arith.constant -1028477387 : i32
    %24 = vector.broadcast %c-1028477387_i32 : i32 to vector<8x64xi32>
    %25 = arith.muli %23, %24 : vector<8x64xi32>
    %c16_i32_4 = arith.constant 16 : i32
    %26 = vector.broadcast %c16_i32_4 : i32 to vector<8x64xi32>
    %27 = arith.shrui %25, %26 : vector<8x64xi32>
    %28 = arith.xori %25, %27 : vector<8x64xi32>
    %c-1717986918_i32 = arith.constant -1717986918 : i32
    %29 = vector.broadcast %c-1717986918_i32 : i32 to vector<8x64xi32>
    %30 = arith.cmpi sge, %28, %29 : vector<8x64xi32>
    %cst = arith.constant 1.11111116 : f32
    %31 = vector.broadcast %cst : f32 to vector<8x64xf32>
    %32 = arith.mulf %3, %31 : vector<8x64xf32>
    %cst_5 = arith.constant 0.000000e+00 : f32
    %33 = vector.broadcast %cst_5 : f32 to vector<8x64xf32>
    %34 = arith.select %30, %32, %33 : vector<8x64xi1>, vector<8x64xf32>
    %c0_6 = arith.constant 0 : index
    %c0_7 = arith.constant 0 : index
    %35 = vector.load %arg4[%c0_6, %c0_7] : memref<8x64xf32, #tpu.memory_space<vmem>>, vector<8x64xf32>
    tpu.vector_store %arg4[%c0_6, %c0_7], %34 {strides = array<i32>} : memref<8x64xf32, #tpu.memory_space<vmem>>, vector<8x64xf32>,
    return
  }
  func.func @transform_0(%arg0: i32, %arg1: memref<1xi32, #tpu.memory_space<smem>>) -> (i32, i32) {
    %c0_i32 = arith.constant 0 : i32
    %c0_i32_0 = arith.constant 0 : i32
    return %arg0, %c0_i32 : i32, i32
  }
  func.func @transform_1(%arg0: i32, %arg1: memref<1xi32, #tpu.memory_space<smem>>) -> (i32, i32) {
    %c0_i32 = arith.constant 0 : i32
    %c0_i32_0 = arith.constant 0 : i32
    return %arg0, %c0_i32 : i32, i32
  }
  func.func @transform_2(%arg0: i32, %arg1: memref<1xi32, #tpu.memory_space<smem>>) -> (i32, i32) {
    %c0_i32 = arith.constant 0 : i32
    %c0_i32_0 = arith.constant 0 : i32
    return %arg0, %c0_i32 : i32, i32
  }
}

</mosaic_0001>

<llo_original>
// kernel: tpu_custom_call.1
$region0: #{tpu_custom_call.1}
  #allocation0 [shape = 'u32[]', space=smem, size = 0x4, offset = 0x4, fixed_abs, tag = 'smem constant byte address 0x4 - core index']
  #allocation1 [shape = 'u32[144,128]{1,0:T(1,128)}', space=vmem, size = 0x12000, scoped, tag = 'internal scratch']
  #allocation2 [shape = 's32[1]{0}', space=sflag, size = 0x4, scoped, tag = 'scoped memory for tpu_custom_call.1']
  #allocation3 [shape = 's32[1]{0:T(128)S(6)}', space=smem, size = 0x200, scoped, tag = 'prefetched SMEM operand 0']
  %s0 = inlined_call_operand.<no memory space> [shape: s32[1], index: 0, kind: input, shape index: {}]
  %s1 = inlined_call_operand.hbm [shape: f32[8,64], index: 1, kind: input, shape index: {}]
  %s2 = inlined_call_operand.hbm [shape: f32[8,32], index: 2, kind: input, shape index: {}]
  %s3 = inlined_call_operand.hbm [shape: f32[8,64], index: 3, kind: output, shape index: {}]
  %s4 = sld [smem:[#allocation0]]
  $region26: #{tpu_custom_call.1} parent=0
    _
  %s6 = ssub.s32 1, %s4
  %s7 = scalar_select 0, %s6, %s4
  %8 = sst [smem:[#allocation3]] %s0
  $region1: #{tpu_custom_call.1} parent=0
    #allocation4 [shape = 'u8[4096]{0}', space=vmem, size = 0x1000, scoped, tag = 'input window, operand 1, single buffered']
    #allocation5 [shape = 's32[1]{0}', space=sflag, size = 0x4, scoped, tag = 'scoped memory for tpu_custom_call.1']
    #allocation6 [shape = 's32[1]{0}', space=sflag, size = 0x4, scoped, tag = 'scoped memory for tpu_custom_call.1']
    #allocation7 [shape = 'u8[4096]{0}', space=vmem, size = 0x1000, scoped, tag = 'input window, operand 2, single buffered']
    #allocation8 [shape = 's32[1]{0}', space=sflag, size = 0x4, scoped, tag = 'scoped memory for tpu_custom_call.1']
    #allocation9 [shape = 'u8[4096]{0}', space=vmem, size = 0x1000, scoped, tag = 'output window, operand 0, single buffered']
    %9 = vsyncpa [#allocation5], 0
    %10 = vsyncpa [#allocation8], 0
    %11 = vsyncpa [#allocation6], 0
    // Predicated region
    $region2: #{tpu_custom_call.1} parent=1 // pred_check
      _
    $region3: #{tpu_custom_call.1} parent=1 // pred_check_branch
      %13 = sbr.rel (0) target = $region5
    $region4: #{tpu_custom_call.1} parent=1 // pred_region
      %s15 = ssub.s32 128, 128
      %16 = vsyncadd [#allocation5], %s15
      %s18 = sshll.u32 [#allocation4], 4
      %s19 = int_to_ptr.vmem [resolvable:$true] %s18
      %21 = dma.hbm_to_vmem [thread:$0]  %s1, 128, %s19, [#allocation5]
    $region5: #{tpu_custom_call.1} parent=1 // pred_fallthru
      _
    // Predicated region
    $region6: #{tpu_custom_call.1} parent=1 // pred_check
      _
    $region7: #{tpu_custom_call.1} parent=1 // pred_check_branch
      %23 = sbr.rel (0) target = $region9
    $region8: #{tpu_custom_call.1} parent=1 // pred_region
      %s25 = ssub.s32 128, 128
      %26 = vsyncadd [#allocation8], %s25
      %s28 = sshll.u32 [#allocation7], 4
      %s29 = int_to_ptr.vmem [resolvable:$true] %s28
      %31 = dma.hbm_to_vmem [thread:$0]  %s2, 128, %s29, [#allocation8]
    $region9: #{tpu_custom_call.1} parent=1 // pred_fallthru
      _
    // Predicated region
    $region10: #{tpu_custom_call.1} parent=1 // pred_check
      _
    $region11: #{tpu_custom_call.1} parent=1 // pred_check_branch
      %33 = sbr.rel (0) target = $region13
    $region12: #{tpu_custom_call.1} parent=1 // pred_region
      %34 = dma.done [#allocation5], 128
    $region13: #{tpu_custom_call.1} parent=1 // pred_fallthru
      _
    // Predicated region
    $region14: #{tpu_custom_call.1} parent=1 // pred_check
      _
    $region15: #{tpu_custom_call.1} parent=1 // pred_check_branch
      %36 = sbr.rel (0) target = $region17
    $region16: #{tpu_custom_call.1} parent=1 // pred_region
      %37 = dma.done [#allocation8], 128
    $region17: #{tpu_custom_call.1} parent=1 // pred_fallthru
      _
    %v38 = vld [vmem:[#allocation4] sm:$0xff]
    %v39 = vld [vmem:[#allocation7] sm:$0xff]
    %41 = vrot.lane.b32.xlu0 %v39, 32
    %v42 = vpop.permute.xlu0 %41
    %vm44 = vcmask 261120
    %v45 = vsel %vm44, %v39, %v42
    %v46 = vadd.f32 %v38, %v45
    %s47 = smul.u32 0, 8
    %v48 = vlaneseq
    %v49 = vshrl.u32 %v48, 7
    %v50 = vlaneseq
    %v51 = vand.u32 %v50, 127
    %v52 = vstv %s47
    %v53 = vadd.s32 %v52, %v49
    %v54 = vmul.u32 %v53, 64
    %v55 = vadd.s32 %v54, %v51
    %s56 = sld [smem:[#allocation3]]
    %s57 = smul.u32 %s56, 2654435769
    %v58 = vstv %s57
    %v59 = vxor.u32 %v55, %v58
    %v60 = vshrl.u32 %v59, 16
    %v61 = vxor.u32 %v59, %v60
    %v62 = vmul.u32 %v61, 2246822507
    %v63 = vshrl.u32 %v62, 13
    %v64 = vxor.u32 %v62, %v63
    %v65 = vmul.u32 %v64, 3266489909
    %v66 = vshrl.u32 %v65, 16
    %v67 = vxor.u32 %v65, %v66
    %vm68 = vcmp.ge.s32.totalorder %v67, 2576980378
    %v69 = vmul.f32 %v46, 1.1111112
    %v70 = vsel %vm68, %v69, 0.0
    %vm71 = vcmask 523264
    %72 = vst.msk [vmem:[#allocation9] sm:$0xff] %vm71, %v70
    // Predicated region
    $region18: #{tpu_custom_call.1} parent=1 // pred_check
      _
    $region19: #{tpu_custom_call.1} parent=1 // pred_check_branch
      %74 = sbr.rel (0) target = $region21
    $region20: #{tpu_custom_call.1} parent=1 // pred_region
      %s76 = ssub.s32 128, 128
      %77 = vsyncadd [#allocation6], %s76
      %s79 = sshll.u32 [#allocation9], 4
      %s80 = int_to_ptr.vmem [resolvable:$true] %s79
      %82 = dma.vmem_to_hbm [thread:$0]  %s80, 128, %s3, [#allocation6]
    $region21: #{tpu_custom_call.1} parent=1 // pred_fallthru
      _
    // Predicated region
    $region22: #{tpu_custom_call.1} parent=1 // pred_check
      _
    $region23: #{tpu_custom_call.1} parent=1 // pred_check_branch
      %84 = sbr.rel (0) target = $region25
    $region24: #{tpu_custom_call.1} parent=1 // pred_region
      %85 = dma.done [#allocation6], 128
    $region25: #{tpu_custom_call.1} parent=1 // pred_fallthru
      _
    %86 = vsyncpa [#allocation5], 1
    %87 = vsyncpa [#allocation8], 1
    %88 = vsyncpa [#allocation6], 1

</llo_original>
